<compile_context>
chip_gen: v6e
topology: v6e:2x2x1
jax: 0.10.0
libtpu: 0.0.40
codegen_flags: <defaults>
</compile_context>

<pallas_src>
import functools

import jax
import jax.numpy as jnp
from jax.experimental import pallas as pl
from jax.experimental.pallas import tpu as pltpu


def _decoder_kernel(xT_ref, w1_ref, b1_ref, w2_ref, oT_ref):
    # xT_ref: (4, tm)   input columns (tokens on the lane axis)
    # w1_ref: (4, 4)    FeedForward.linear.weight  (out, in)
    # b1_ref: (4, 1)    FeedForward.linear.bias
    # w2_ref: (12, 4)   Decoder.linear.weight (tied embedding), no bias
    # oT_ref: (12, tm)
    x = xT_ref[...]          # (4, tm)
    w1 = w1_ref[...]         # (4, 4)
    b1 = b1_ref[...]         # (4, 1)
    w2 = w2_ref[...]         # (12, 4)

    # Layer 1: h^T = ReLU(W1 @ x^T + b1) as 4 VPU broadcast mul-adds.
    # Bias is folded into the accumulator init (no extra add pass).
    h = b1 + w1[:, 0:1] * x[0:1, :]               # (4, tm)
    for k in range(1, 4):                          # static unroll, K = 4
        h = h + w1[:, k:k + 1] * x[k:k + 1, :]
    h = jnp.maximum(h, 0.0)

    # Layer 2: out^T = W2 @ h^T, again 4 VPU broadcast mul-adds.
    o = w2[:, 0:1] * h[0:1, :]                     # (12, tm)
    for k in range(1, 4):
        o = o + w2[:, k:k + 1] * h[k:k + 1, :]

    oT_ref[...] = o.astype(oT_ref.dtype)


def _select_tile(M, tm_target):
    """Lane-tile size: multiple of 128, big enough to amortize per-step
    overhead, >= 2 tiles when M allows (v7x megacore), never past M."""
    def rup(v, m):
        return ((v + m - 1) // m) * m

    tm_target = max(128, rup(int(tm_target), 128))
    m_cover = rup(M, 128)
    if m_cover <= 128:
        return 128
    half_cover = rup((M + 1) // 2, 128)   # ensures grid_m >= 2 for medium M
    return min(tm_target, max(128, half_cover), m_cover)


def decoder_forward_transposed(xT, w1, b1, w2, *, tm_target=32768):
    """Transposed-layout entry point.

    xT: (4, M) float32 — features on sublanes, tokens on lanes.
    Returns out^T: (12, M) float32.

    Callers that can keep activations in this layout (or fuse the final
    un-transpose into the logits consumer) avoid all boundary transposes.
    """
    D, M = xT.shape
    assert D == 4 and w1.shape == (4, 4) and b1.shape == (4,) and w2.shape == (12, 4)

    tm = _select_tile(M, tm_target)
    grid_m = -(-M // tm)   # ceil-div; last block may be ragged (Pallas masks it)

    return pl.pallas_call(
        _decoder_kernel,
        out_shape=jax.ShapeDtypeStruct((12, M), jnp.float32),
        grid=(grid_m,),
        in_specs=[
            pl.BlockSpec((4, tm), lambda i: (0, i)),     # x^T tile
            pl.BlockSpec((4, 4), lambda i: (0, 0)),      # W1 (resident)
            pl.BlockSpec((4, 1), lambda i: (0, 0)),      # b1 (resident)
            pl.BlockSpec((12, 4), lambda i: (0, 0)),     # W2 (resident)
        ],
        out_specs=pl.BlockSpec((12, tm), lambda i: (0, i)),
        compiler_params=pltpu.CompilerParams(
            dimension_semantics=("parallel",),           # megacore split on v7x
        ),
    )(xT, w1, b1.reshape(4, 1), w2)


@functools.partial(jax.jit, static_argnames=("tm_target",))
def decoder_forward(x, w1, b1, w2, *, tm_target=32768):
    """Natural-layout wrapper. x: (B, S, 4) float32 -> (B, S, 12) float32.

    jit ensures the boundary reshapes/transposes are compiled+fused instead of
    dispatched as eager XLA ops.
    """
    B, S, D = x.shape
    M = B * S
    xT = x.reshape(M, D).T                                  # (4, M)
    outT = decoder_forward_transposed(xT, w1, b1, w2, tm_target=tm_target)
    return outT.T.reshape(B, S, 12)


def _reference(x, w1, b1, w2):
    h = jnp.maximum(jnp.einsum("bsd,od->bso", x, w1) + b1, 0.0)
    return jnp.einsum("bsd,od->bso", h, w2)


if __name__ == "__main__":
    key = jax.random.PRNGKey(0)
    k_x, k_w1, k_b1, k_emb, k_buf, k_x2 = jax.random.split(key, 6)

    # FeedForward.linear: Linear(4, 4)
    w1 = jax.random.normal(k_w1, (4, 4), dtype=jnp.float32) * 0.5
    b1 = jax.random.normal(k_b1, (4,), dtype=jnp.float32) * 0.1
    # Decoder.linear weight tied to Embedding(12, 4).weight -> shape (12, 4)
    w2 = jax.random.normal(k_emb, (12, 4), dtype=jnp.float32) * 0.5
    # Registered buffer (unused in forward) — allocated for parity only.
    buffer = jax.random.normal(k_buf, (4, 4), dtype=jnp.float32)

    # Primary shape implied by the test module: batch=2, seq=8, features=4.
    x = jax.random.normal(k_x, (2, 8, 4), dtype=jnp.float32)
    out = jax.block_until_ready(decoder_forward(x, w1, b1, w2))
    ref = _reference(x, w1, b1, w2)
    assert out.shape == (2, 8, 12)
    assert jnp.allclose(out, ref, atol=1e-5, rtol=1e-5)

    # Coverage requested by review: M not a multiple of 128 AND grid_m > 1
    # (ragged last block + multi-tile "parallel" path), with a small tile.
    x2 = jax.random.normal(k_x2, (3, 173, 4), dtype=jnp.float32)   # M = 519
    out2 = jax.block_until_ready(decoder_forward(x2, w1, b1, w2, tm_target=128))
    ref2 = _reference(x2, w1, b1, w2)
    assert out2.shape == (3, 173, 12)
    assert jnp.allclose(out2, ref2, atol=1e-5, rtol=1e-5)

    print("KERNEL_OK")
</pallas_src>

<mosaic_0001>
module attributes {stable_mosaic.version = 11 : i64} {
  func.func @_decoder_kernel(%arg0: i32, %arg1: memref<4x128xf32, #tpu.memory_space<vmem>>, %arg2: memref<4x4xf32, #tpu.memory_space<vmem>>, %arg3: memref<4x1xf32, #tpu.memory_space<vmem>>, %arg4: memref<12x4xf32, #tpu.memory_space<vmem>>, %arg5: memref<12x128xf32, #tpu.memory_space<vmem>>) attributes {dimension_semantics = [#tpu.dimension_semantics<parallel>], iteration_bounds = array<i64: 1>, scalar_prefetch = 0 : i64, scratch_operands = 0 : i64, tpu.core_type = #tpu.core_type<tc>, window_params = [{transform_indices = @transform_0, window_bounds = array<i64: 4, 128>}, {pipeline_mode = #tpu.pipeline_mode<synchronous>, transform_indices = @transform_1, window_bounds = array<i64: 4, 4>}, {pipeline_mode = #tpu.pipeline_mode<synchronous>, transform_indices = @transform_2, window_bounds = array<i64: 4, 1>}, {pipeline_mode = #tpu.pipeline_mode<synchronous>, transform_indices = @transform_3, window_bounds = array<i64: 12, 4>}, {transform_indices = @transform_4, window_bounds = array<i64: 12, 128>}]} {
    %c0 = arith.constant 0 : index
    %c0_0 = arith.constant 0 : index
    %0 = vector.load %arg1[%c0, %c0_0] : memref<4x128xf32, #tpu.memory_space<vmem>>, vector<4x128xf32>
    %c0_1 = arith.constant 0 : index
    %c0_2 = arith.constant 0 : index
    %1 = vector.load %arg2[%c0_1, %c0_2] : memref<4x4xf32, #tpu.memory_space<vmem>>, vector<4x4xf32>
    %c0_3 = arith.constant 0 : index
    %c0_4 = arith.constant 0 : index
    %2 = vector.load %arg3[%c0_3, %c0_4] : memref<4x1xf32, #tpu.memory_space<vmem>>, vector<4x1xf32>
    %c0_5 = arith.constant 0 : index
    %c0_6 = arith.constant 0 : index
    %3 = vector.load %arg4[%c0_5, %c0_6] : memref<12x4xf32, #tpu.memory_space<vmem>>, vector<12x4xf32>
    %4 = vector.extract_strided_slice %1 {offsets = [0, 0], sizes = [4, 1], strides = [1, 1]} : vector<4x4xf32> to vector<4x1xf32>
    %5 = vector.extract_strided_slice %0 {offsets = [0, 0], sizes = [1, 128], strides = [1, 1]} : vector<4x128xf32> to vector<1x128xf32>
    %6 = vector.broadcast %4 : vector<4x1xf32> to vector<4x128xf32>
    %7 = vector.broadcast %5 : vector<1x128xf32> to vector<4x128xf32>
    %8 = arith.mulf %6, %7 : vector<4x128xf32>
    %9 = vector.broadcast %2 : vector<4x1xf32> to vector<4x128xf32>
    %10 = arith.addf %9, %8 : vector<4x128xf32>
    %11 = vector.extract_strided_slice %1 {offsets = [0, 1], sizes = [4, 1], strides = [1, 1]} : vector<4x4xf32> to vector<4x1xf32>
    %12 = vector.extract_strided_slice %0 {offsets = [1, 0], sizes = [1, 128], strides = [1, 1]} : vector<4x128xf32> to vector<1x128xf32>
    %13 = vector.broadcast %11 : vector<4x1xf32> to vector<4x128xf32>
    %14 = vector.broadcast %12 : vector<1x128xf32> to vector<4x128xf32>
    %15 = arith.mulf %13, %14 : vector<4x128xf32>
    %16 = arith.addf %10, %15 : vector<4x128xf32>
    %17 = vector.extract_strided_slice %1 {offsets = [0, 2], sizes = [4, 1], strides = [1, 1]} : vector<4x4xf32> to vector<4x1xf32>
    %18 = vector.extract_strided_slice %0 {offsets = [2, 0], sizes = [1, 128], strides = [1, 1]} : vector<4x128xf32> to vector<1x128xf32>
    %19 = vector.broadcast %17 : vector<4x1xf32> to vector<4x128xf32>
    %20 = vector.broadcast %18 : vector<1x128xf32> to vector<4x128xf32>
    %21 = arith.mulf %19, %20 : vector<4x128xf32>
    %22 = arith.addf %16, %21 : vector<4x128xf32>
    %23 = vector.extract_strided_slice %1 {offsets = [0, 3], sizes = [4, 1], strides = [1, 1]} : vector<4x4xf32> to vector<4x1xf32>
    %24 = vector.extract_strided_slice %0 {offsets = [3, 0], sizes = [1, 128], strides = [1, 1]} : vector<4x128xf32> to vector<1x128xf32>
    %25 = vector.broadcast %23 : vector<4x1xf32> to vector<4x128xf32>
    %26 = vector.broadcast %24 : vector<1x128xf32> to vector<4x128xf32>
    %27 = arith.mulf %25, %26 : vector<4x128xf32>
    %28 = arith.addf %22, %27 : vector<4x128xf32>
    %cst = arith.constant 0.000000e+00 : f32
    %29 = vector.broadcast %cst : f32 to vector<4x128xf32>
    %30 = arith.maximumf %28, %29 : vector<4x128xf32>
    %31 = vector.extract_strided_slice %3 {offsets = [0, 0], sizes = [12, 1], strides = [1, 1]} : vector<12x4xf32> to vector<12x1xf32>
    %32 = vector.extract_strided_slice %30 {offsets = [0, 0], sizes = [1, 128], strides = [1, 1]} : vector<4x128xf32> to vector<1x128xf32>
    %33 = vector.broadcast %31 : vector<12x1xf32> to vector<12x128xf32>
    %34 = vector.broadcast %32 : vector<1x128xf32> to vector<12x128xf32>
    %35 = arith.mulf %33, %34 : vector<12x128xf32>
    %36 = vector.extract_strided_slice %3 {offsets = [0, 1], sizes = [12, 1], strides = [1, 1]} : vector<12x4xf32> to vector<12x1xf32>
    %37 = vector.extract_strided_slice %30 {offsets = [1, 0], sizes = [1, 128], strides = [1, 1]} : vector<4x128xf32> to vector<1x128xf32>
    %38 = vector.broadcast %36 : vector<12x1xf32> to vector<12x128xf32>
    %39 = vector.broadcast %37 : vector<1x128xf32> to vector<12x128xf32>
    %40 = arith.mulf %38, %39 : vector<12x128xf32>
    %41 = arith.addf %35, %40 : vector<12x128xf32>
    %42 = vector.extract_strided_slice %3 {offsets = [0, 2], sizes = [12, 1], strides = [1, 1]} : vector<12x4xf32> to vector<12x1xf32>
    %43 = vector.extract_strided_slice %30 {offsets = [2, 0], sizes = [1, 128], strides = [1, 1]} : vector<4x128xf32> to vector<1x128xf32>
    %44 = vector.broadcast %42 : vector<12x1xf32> to vector<12x128xf32>
    %45 = vector.broadcast %43 : vector<1x128xf32> to vector<12x128xf32>
    %46 = arith.mulf %44, %45 : vector<12x128xf32>
    %47 = arith.addf %41, %46 : vector<12x128xf32>
    %48 = vector.extract_strided_slice %3 {offsets = [0, 3], sizes = [12, 1], strides = [1, 1]} : vector<12x4xf32> to vector<12x1xf32>
    %49 = vector.extract_strided_slice %30 {offsets = [3, 0], sizes = [1, 128], strides = [1, 1]} : vector<4x128xf32> to vector<1x128xf32>
    %50 = vector.broadcast %48 : vector<12x1xf32> to vector<12x128xf32>
    %51 = vector.broadcast %49 : vector<1x128xf32> to vector<12x128xf32>
    %52 = arith.mulf %50, %51 : vector<12x128xf32>
    %53 = arith.addf %47, %52 : vector<12x128xf32>
    %c0_7 = arith.constant 0 : index
    %c0_8 = arith.constant 0 : index
    %54 = vector.load %arg5[%c0_7, %c0_8] : memref<12x128xf32, #tpu.memory_space<vmem>>, vector<12x128xf32>
    tpu.vector_store %arg5[%c0_7, %c0_8], %53 {strides = array<i32>} : memref<12x128xf32, #tpu.memory_space<vmem>>, vector<12x128xf32>,
    return
  }
  func.func @transform_0(%arg0: i32) -> (i32, i32) {
    %c0_i32 = arith.constant 0 : i32
    %c0_i32_0 = arith.constant 0 : i32
    return %c0_i32, %arg0 : i32, i32
  }
  func.func @transform_1(%arg0: i32) -> (i32, i32) {
    %c0_i32 = arith.constant 0 : i32
    %c0_i32_0 = arith.constant 0 : i32
    %c0_i32_1 = arith.constant 0 : i32
    return %c0_i32, %c0_i32_0 : i32, i32
  }
  func.func @transform_2(%arg0: i32) -> (i32, i32) {
    %c0_i32 = arith.constant 0 : i32
    %c0_i32_0 = arith.constant 0 : i32
    %c0_i32_1 = arith.constant 0 : i32
    return %c0_i32, %c0_i32_0 : i32, i32
  }
  func.func @transform_3(%arg0: i32) -> (i32, i32) {
    %c0_i32 = arith.constant 0 : i32
    %c0_i32_0 = arith.constant 0 : i32
    %c0_i32_1 = arith.constant 0 : i32
    return %c0_i32, %c0_i32_0 : i32, i32
  }
  func.func @transform_4(%arg0: i32) -> (i32, i32) {
    %c0_i32 = arith.constant 0 : i32
    %c0_i32_0 = arith.constant 0 : i32
    return %c0_i32, %arg0 : i32, i32
  }
}

</mosaic_0001>

<llo_original>
// kernel: decoder_forward.1
$region0: #{decoder_forward.1}
  #allocation0 [shape = 'u32[]', space=smem, size = 0x4, offset = 0x4, fixed_abs, tag = 'smem constant byte address 0x4 - core index']
  #allocation1 [shape = 'u32[144,128]{1,0:T(1,128)}', space=vmem, size = 0x12000, scoped, tag = 'internal scratch']
  %s0 = inlined_call_operand.vmem [shape: f32[4,16], index: 0, kind: input, shape index: {}]
  %s1 = inlined_call_operand.vmem [shape: f32[4,4], index: 1, kind: input, shape index: {}]
  %s2 = inlined_call_operand.vmem [shape: f32[4,1], index: 2, kind: input, shape index: {}]
  %s3 = inlined_call_operand.vmem [shape: f32[12,4], index: 3, kind: input, shape index: {}]
  %s4 = inlined_call_operand.vmem [shape: f32[12,16], index: 4, kind: output, shape index: {}]
  %s5 = sld [smem:[#allocation0]]
  $region26: #{decoder_forward.1} parent=0
    _
  %s7 = ssub.s32 1, %s5
  %s8 = scalar_select 0, %s7, %s5
  // Predicated region
  $region2: #{decoder_forward.1} parent=0 // pred_check
    _
  $region3: #{decoder_forward.1} parent=0 // pred_check_branch
    %10 = sbr.rel (0) target = $region5
  $region4: #{decoder_forward.1} parent=0 // pred_region
    _
  $region5: #{decoder_forward.1} parent=0 // pred_fallthru
    _
  // Predicated region
  $region6: #{decoder_forward.1} parent=0 // pred_check
    _
  $region7: #{decoder_forward.1} parent=0 // pred_check_branch
    %12 = sbr.rel (0) target = $region9
  $region8: #{decoder_forward.1} parent=0 // pred_region
    _
  $region9: #{decoder_forward.1} parent=0 // pred_fallthru
    _
  // Predicated region
  $region10: #{decoder_forward.1} parent=0 // pred_check
    _
  $region11: #{decoder_forward.1} parent=0 // pred_check_branch
    %14 = sbr.rel (0) target = $region13
  $region12: #{decoder_forward.1} parent=0 // pred_region
    _
  $region13: #{decoder_forward.1} parent=0 // pred_fallthru
    _
  // Predicated region
  $region14: #{decoder_forward.1} parent=0 // pred_check
    _
  $region15: #{decoder_forward.1} parent=0 // pred_check_branch
    %16 = sbr.rel (0) target = $region17
  $region16: #{decoder_forward.1} parent=0 // pred_region
    _
  $region17: #{decoder_forward.1} parent=0 // pred_fallthru
    _
  %v17 = vld [vmem:[%s0] sm:$0xf]
  %v18 = vld [vmem:[%s1] sm:$0xf]
  %v19 = vld [vmem:[%s2] sm:$0xf]
  %v20 = vld [vmem:[%s3] sm:$0xff]
  %v21 = vld [vmem:[%s3 + $0x8] sm:$0xf]
  %23 = vset.pattern.permute.xlu0 0
  %24 = vperm.xlu0 %23, %v18
  %v25 = vpop.permute.xlu0 %24
  %v27 = vlaneseq
  %v28 = vshrl.u32 %v27, 7
  %v29 = vsub.s32 0, %v28
  %v30 = vrot.slane %v17, %v29
  %v31 = vmul.f32 %v25, %v30
  %33 = vset.pattern.permute.xlu0 0
  %34 = vperm.xlu0 %33, %v19
  %v35 = vpop.permute.xlu0 %34
  %v37 = vadd.f32 %v35, %v31
  %38 = vset.pattern.permute.xlu0 1
  %39 = vperm.xlu0 %38, %v18
  %v40 = vpop.permute.xlu0 %39
  %v42 = vlaneseq
  %v43 = vshrl.u32 %v42, 7
  %v44 = vsub.s32 1, %v43
  %v45 = vrot.slane %v17, %v44
  %v46 = vmul.f32 %v40, %v45
  %v47 = vadd.f32 %v37, %v46
  %48 = vset.pattern.permute.xlu0 2
  %49 = vperm.xlu0 %48, %v18
  %v50 = vpop.permute.xlu0 %49
  %v52 = vlaneseq
  %v53 = vshrl.u32 %v52, 7
  %v54 = vsub.s32 2, %v53
  %v55 = vrot.slane %v17, %v54
  %v56 = vmul.f32 %v50, %v55
  %v57 = vadd.f32 %v47, %v56
  %58 = vset.pattern.permute.xlu0 3
  %59 = vperm.xlu0 %58, %v18
  %v60 = vpop.permute.xlu0 %59
  %v62 = vlaneseq
  %v63 = vshrl.u32 %v62, 7
  %v64 = vsub.s32 3, %v63
  %v65 = vrot.slane %v17, %v64
  %v66 = vmul.f32 %v60, %v65
  %v67 = vadd.f32 %v57, %v66
  %v68 = vmax.f32 %v67, 0.0
  %70 = vset.pattern.permute.xlu0 0
  %71 = vperm.xlu0 %70, %v20
  %v72 = vpop.permute.xlu0 %71
  %75 = vset.pattern.permute.xlu0 0
  %76 = vperm.xlu0 %75, %v21
  %v77 = vpop.permute.xlu0 %76
  %v79 = vlaneseq
  %v80 = vshrl.u32 %v79, 7
  %v81 = vsub.s32 0, %v80
  %v82 = vrot.slane %v68, %v81
  %v83 = vmul.f32 %v72, %v82
  %v84 = vmul.f32 %v77, %v82
  %85 = vset.pattern.permute.xlu0 1
  %86 = vperm.xlu0 %85, %v20
  %v87 = vpop.permute.xlu0 %86
  %89 = vset.pattern.permute.xlu0 1
  %90 = vperm.xlu0 %89, %v21
  %v91 = vpop.permute.xlu0 %90
  %v93 = vlaneseq
  %v94 = vshrl.u32 %v93, 7
  %v95 = vsub.s32 1, %v94
  %v96 = vrot.slane %v68, %v95
  %v97 = vmul.f32 %v87, %v96
  %v98 = vmul.f32 %v91, %v96
  %v99 = vadd.f32 %v83, %v97
  %v100 = vadd.f32 %v84, %v98
  %101 = vset.pattern.permute.xlu0 2
  %102 = vperm.xlu0 %101, %v20
  %v103 = vpop.permute.xlu0 %102
  %105 = vset.pattern.permute.xlu0 2
  %106 = vperm.xlu0 %105, %v21
  %v107 = vpop.permute.xlu0 %106
  %v109 = vlaneseq
  %v110 = vshrl.u32 %v109, 7
  %v111 = vsub.s32 2, %v110
  %v112 = vrot.slane %v68, %v111
  %v113 = vmul.f32 %v103, %v112
  %v114 = vmul.f32 %v107, %v112
  %v115 = vadd.f32 %v99, %v113
  %v116 = vadd.f32 %v100, %v114
  %117 = vset.pattern.permute.xlu0 3
  %118 = vperm.xlu0 %117, %v20
  %v119 = vpop.permute.xlu0 %118
  %121 = vset.pattern.permute.xlu0 3
  %122 = vperm.xlu0 %121, %v21
  %v123 = vpop.permute.xlu0 %122
  %v125 = vlaneseq
  %v126 = vshrl.u32 %v125, 7
  %v127 = vsub.s32 3, %v126
  %v128 = vrot.slane %v68, %v127
  %v129 = vmul.f32 %v119, %v128
  %v130 = vmul.f32 %v123, %v128
  %v131 = vadd.f32 %v115, %v129
  %v132 = vadd.f32 %v116, %v130
  %133 = vst [vmem:[%s4] sm:$0xff] %v131
  %134 = vst [vmem:[%s4 + $0x8] sm:$0xf] %v132
  // Predicated region
  $region18: #{decoder_forward.1} parent=0 // pred_check
    _
  $region19: #{decoder_forward.1} parent=0 // pred_check_branch
    %136 = sbr.rel (0) target = $region21
  $region20: #{decoder_forward.1} parent=0 // pred_region
    _
  $region21: #{decoder_forward.1} parent=0 // pred_fallthru
    _
  // Predicated region
  $region22: #{decoder_forward.1} parent=0 // pred_check
    _
  $region23: #{decoder_forward.1} parent=0 // pred_check_branch
    %138 = sbr.rel (0) target = $region25
  $region24: #{decoder_forward.1} parent=0 // pred_region
    _
  $region25: #{decoder_forward.1} parent=0 // pred_fallthru
    _

</llo_original>
